<compile_context>
chip_gen: v7x
topology: tpu7x:2x2x1
jax: 0.10.0
libtpu: 0.0.40
codegen_flags: <defaults>
</compile_context>

<pallas_src>
import jax
import jax.numpy as jnp
from jax.experimental import pallas as pl
from jax.experimental.pallas import tpu as pltpu


def _add_pe_kernel(x_ref, pe_ref, o_ref):
    # x_ref / o_ref: (TB, TC) tile of the flattened activations.
    # pe_ref:        (1, TC) tile of the flattened positional encoding;
    #                (1, TC) + (TB, TC) broadcasts over the sublane dim.
    o_ref[...] = x_ref[...] + pe_ref[...]


def _device_params():
    """Per-generation (block_byte_target, vmem_budget, vmem_ceiling)."""
    try:
        kind = jax.devices()[0].device_kind.lower()
    except Exception:  # pragma: no cover - defensive; fall back to safe defaults
        kind = ""
    if "v7" in kind:
        # 3.2 TB/s HBM: 4 MiB blocks amortise the per-step overhead; 32 MiB
        # scoped default / 64 MiB physical -> keep our buffers <= ~24 MiB.
        return 4 << 20, 24 << 20, 56 << 20
    if "v5 lite" in kind or "v5lite" in kind or "v5e" in kind:
        # v5e scoped-VMEM default is 16 MiB -> cap buffers at ~12 MiB; at
        # 0.82 TB/s bigger blocks buy nothing anyway.
        return 2 << 20, 12 << 20, 100 << 20
    # v6e and other chips: 2 MiB blocks already sit at the measured 85-86% of
    # HBM roofline; 32 MiB scoped default -> ~24 MiB buffer budget.
    return 2 << 20, 24 << 20, 100 << 20


def _choose_tiles(rows, cols, itemsize, target_bytes, budget_bytes):
    """Pick (TB, TC) for the flattened (rows, cols) = (B, S*D) problem.

    TB: divisor of rows, rounded to the dtype's sublane packing when possible
        (8 for f32, 16 for bf16, 32 for int8/fp8), else a multiple of 8, else
        the full row extent (full-dim blocks are exempt from the (8,128) rule).
    TC: multiple-of-128 divisor of cols (or full cols if not 128-aligned),
        sized so TB*TC*itemsize is as close as possible to the per-generation
        byte target while the double-buffered working set stays in budget.
    """
    sub = 8 * max(1, 4 // max(1, itemsize))  # sublane packing multiple

    if rows % sub == 0:
        row_cands = [d for d in range(sub, rows + 1, sub) if rows % d == 0]
    elif rows % 8 == 0:
        row_cands = [d for d in range(8, rows + 1, 8) if rows % d == 0]
    else:
        row_cands = [rows]
    # Keep row tiles modest so the lane tile carries the block size.
    row_cands = [d for d in row_cands if d <= 512] or [min(row_cands)]

    if cols % 128 == 0:
        col_cands = [d for d in range(128, cols + 1, 128) if cols % d == 0]
    else:
        col_cands = [cols]

    def est_vmem(tb, tc):
        # x + out: 2 double-buffered (tb, tc) tiles each;
        # pe: 2 buffers of a (1, tc) block padded to 8 sublanes in VMEM.
        return (4 * tb * tc + 2 * 8 * tc) * itemsize

    best = None
    for tb in row_cands:
        for tc in col_cands:
            blk = tb * tc * itemsize
            vmem = est_vmem(tb, tc)
            over = vmem > budget_bytes
            n_steps = (rows // tb) * (cols // tc)
            # Primary: fit the VMEM budget.  Secondary: block bytes near the
            # target (or minimal VMEM if nothing fits).  Tie-breaks: even grid
            # step count (balanced v7x TensorCore split), larger lane tile.
            dist = vmem if over else abs(blk - target_bytes)
            parity = 0 if (n_steps == 1 or n_steps % 2 == 0) else 1
            key = (over, dist, parity, -tc)
            if best is None or key < best[0]:
                best = (key, tb, tc)

    _, tb, tc = best
    return tb, tc, est_vmem(tb, tc)


def positional_encoding(x: jax.Array, pe: jax.Array) -> jax.Array:
    """x: (B, S, D); pe: (max_len, D). Returns x + pe[:S] (broadcast over B)."""
    B, S, D = x.shape
    max_len, d_model = pe.shape
    assert d_model == D, f"pe d_model {d_model} != x d_model {D}"
    assert S <= max_len, f"sequence length {S} exceeds max_len {max_len}"

    C = S * D
    # Tiny wrapper glue (touches only S*D elements vs B*S*D in the kernel):
    # slice the needed rows, match x's dtype, flatten to lane-dense layouts.
    pe_row = pe[:S, :].astype(x.dtype).reshape(1, C)
    x2 = x.reshape(B, C)

    itemsize = jnp.dtype(x.dtype).itemsize
    target_bytes, budget_bytes, vmem_ceiling = _device_params()
    tb, tc, est_vmem = _choose_tiles(B, C, itemsize, target_bytes, budget_bytes)

    # Only raise the scoped-VMEM limit for degenerate shapes (e.g. huge
    # non-128-aligned S*D) where even the smallest legal block busts budget.
    vmem_limit = None
    if est_vmem > budget_bytes:
        vmem_limit = int(min(max(est_vmem * 3 // 2, budget_bytes), vmem_ceiling))

    # Grid = (column blocks, row blocks): batch (row) axis is innermost, so
    # pe's block index (0, j) is unchanged across consecutive steps and its
    # DMA is skipped -> pe is read from HBM exactly once per column block.
    grid = (C // tc, B // tb)

    out2 = pl.pallas_call(
        _add_pe_kernel,
        out_shape=jax.ShapeDtypeStruct((B, C), x.dtype),
        grid_spec=pltpu.PrefetchScalarGridSpec(
            num_scalar_prefetch=0,
            grid=grid,
            in_specs=[
                pl.BlockSpec((tb, tc), lambda j, i: (i, j)),
                pl.BlockSpec((1, tc), lambda j, i: (0, j)),
            ],
            out_specs=pl.BlockSpec((tb, tc), lambda j, i: (i, j)),
        ),
        compiler_params=pltpu.CompilerParams(
            dimension_semantics=("parallel", "parallel"),
            vmem_limit_bytes=vmem_limit,
        ),
    )(x2, pe_row)

    return out2.reshape(B, S, D)


def init_pe(key, max_len: int, d_model: int, dtype=jnp.float32) -> jax.Array:
    # xavier_uniform_ on a (max_len, d_model) parameter:
    # bound = sqrt(6 / (fan_in + fan_out)).
    bound = (6.0 / (max_len + d_model)) ** 0.5
    pe = jax.random.uniform(
        key, (max_len, d_model), dtype=jnp.float32, minval=-bound, maxval=bound
    )
    return pe.astype(dtype)


if __name__ == "__main__":
    key = jax.random.PRNGKey(0)
    k_pe, k_pe2, k_pe3, k_x1, k_x2, k_x3 = jax.random.split(key, 6)

    # Small config matching the module's implied (batch, seq, d_model) layout.
    B, S, D = 2, 8, 32
    pe = init_pe(k_pe, 5000, D)
    x = jax.random.normal(k_x1, (B, S, D), dtype=jnp.float32)
    ref = x + pe[:S, :][None, :, :]
    out = jax.block_until_ready(positional_encoding(x, pe))
    assert out.shape == (B, S, D)
    assert jnp.allclose(out, ref, atol=1e-6), "mismatch vs reference (small)"

    # Column-tiled path: multi-step grid, pe column index_map varies with j.
    B2, S2, D2 = 8, 1024, 128
    pe2 = init_pe(k_pe2, 2048, D2)
    x_big = jax.random.normal(k_x2, (B2, S2, D2), dtype=jnp.float32)
    ref_big = x_big + pe2[:S2, :][None, :, :]
    out_big = jax.block_until_ready(positional_encoding(x_big, pe2))
    assert out_big.shape == (B2, S2, D2)
    assert jnp.allclose(out_big, ref_big, atol=1e-6), "mismatch vs reference (tiled)"

    # bf16 path: exercises the sublane-packed (multiple-of-16) row tile.
    B3, S3, D3 = 16, 128, 64
    pe3 = init_pe(k_pe3, 512, D3, dtype=jnp.bfloat16)
    x_bf = jax.random.normal(k_x3, (B3, S3, D3), dtype=jnp.float32).astype(jnp.bfloat16)
    ref_bf = x_bf + pe3[:S3, :][None, :, :]
    out_bf = jax.block_until_ready(positional_encoding(x_bf, pe3))
    assert out_bf.shape == (B3, S3, D3)
    assert jnp.allclose(
        out_bf.astype(jnp.float32), ref_bf.astype(jnp.float32), atol=1e-2
    ), "mismatch vs reference (bf16)"

    print("KERNEL_OK")
</pallas_src>

<mosaic_0001>
module attributes {stable_mosaic.version = 11 : i64} {
  func.func @_add_pe_kernel(%arg0: i32, %arg1: i32, %arg2: memref<2x256xf32, #tpu.memory_space<vmem>>, %arg3: memref<1x256xf32, #tpu.memory_space<vmem>>, %arg4: memref<2x256xf32, #tpu.memory_space<vmem>>) attributes {dimension_semantics = [#tpu.dimension_semantics<parallel>, #tpu.dimension_semantics<parallel>], iteration_bounds = array<i64: 1, 1>, scalar_prefetch = 0 : i64, scratch_operands = 0 : i64, tpu.core_type = #tpu.core_type<tc>, window_params = [{transform_indices = @transform_0, window_bounds = array<i64: 2, 256>}, {transform_indices = @transform_1, window_bounds = array<i64: 1, 256>}, {transform_indices = @transform_2, window_bounds = array<i64: 2, 256>}]} {
    %c0 = arith.constant 0 : index
    %c0_0 = arith.constant 0 : index
    %0 = vector.load %arg2[%c0, %c0_0] : memref<2x256xf32, #tpu.memory_space<vmem>>, vector<2x256xf32>
    %c0_1 = arith.constant 0 : index
    %c0_2 = arith.constant 0 : index
    %1 = vector.load %arg3[%c0_1, %c0_2] : memref<1x256xf32, #tpu.memory_space<vmem>>, vector<1x256xf32>
    %2 = vector.broadcast %1 : vector<1x256xf32> to vector<2x256xf32>
    %3 = arith.addf %0, %2 : vector<2x256xf32>
    %c0_3 = arith.constant 0 : index
    %c0_4 = arith.constant 0 : index
    %4 = vector.load %arg4[%c0_3, %c0_4] : memref<2x256xf32, #tpu.memory_space<vmem>>, vector<2x256xf32>
    tpu.vector_store %arg4[%c0_3, %c0_4], %3 {strides = array<i32>} : memref<2x256xf32, #tpu.memory_space<vmem>>, vector<2x256xf32>,
    return
  }
  func.func @transform_0(%arg0: i32, %arg1: i32) -> (i32, i32) {
    %c0_i32 = arith.constant 0 : i32
    return %arg1, %arg0 : i32, i32
  }
  func.func @transform_1(%arg0: i32, %arg1: i32) -> (i32, i32) {
    %c0_i32 = arith.constant 0 : i32
    %c0_i32_0 = arith.constant 0 : i32
    return %c0_i32, %arg0 : i32, i32
  }
  func.func @transform_2(%arg0: i32, %arg1: i32) -> (i32, i32) {
    %c0_i32 = arith.constant 0 : i32
    return %arg1, %arg0 : i32, i32
  }
}

</mosaic_0001>

<llo_original>
// kernel: tpu_custom_call.1
$region0: #{tpu_custom_call.1}
  #allocation0 [shape = 'u32[]', space=smem, size = 0x4, offset = 0x4, fixed_abs, tag = 'smem constant byte address 0x4 - core index']
  #allocation1 [shape = 'u32[144,128]{1,0:T(1,128)}', space=vmem, size = 0x12000, scoped, tag = 'internal scratch']
  %s0 = inlined_call_operand.hbm [shape: f32[2,256], index: 0, kind: input, shape index: {}]
  %s1 = inlined_call_operand.vmem [shape: f32[1,256], index: 1, kind: input, shape index: {}]
  %s2 = inlined_call_operand.hbm [shape: f32[2,256], index: 2, kind: output, shape index: {}]
  %s3 = sld [smem:[#allocation0]]
  $region22: #{tpu_custom_call.1} parent=0
    _
  %s5 = ssub.s32 1, %s3
  %s6 = scalar_select 0, %s5, %s3
  $region1: #{tpu_custom_call.1} parent=0
    #allocation2 [shape = 'u8[2048]{0}', space=vmem, size = 0x800, scoped, tag = 'input window, operand 0, single buffered']
    #allocation3 [shape = 's32[1]{0}', space=sflag, size = 0x4, scoped, tag = 'scoped memory for tpu_custom_call.1']
    #allocation4 [shape = 's32[1]{0}', space=sflag, size = 0x4, scoped, tag = 'scoped memory for tpu_custom_call.1']
    #allocation5 [shape = 'u8[2048]{0}', space=vmem, size = 0x800, scoped, tag = 'output window, operand 0, single buffered']
    %7 = vsyncpa [#allocation3], 0
    %8 = vsyncpa [#allocation4], 0
    // Predicated region
    $region2: #{tpu_custom_call.1} parent=1 // pred_check
      _
    $region3: #{tpu_custom_call.1} parent=1 // pred_check_branch
      %10 = sbr.rel (0) target = $region5
    $region4: #{tpu_custom_call.1} parent=1 // pred_region
      %s12 = ssub.s32 64, 64
      %13 = vsyncadd [#allocation3], %s12
      %s15 = sshll.u32 [#allocation2], 4
      %s16 = int_to_ptr.vmem [resolvable:$true] %s15
      %18 = dma.hbm_to_vmem [thread:$0]  %s0, 64, %s16, [#allocation3]
    $region5: #{tpu_custom_call.1} parent=1 // pred_fallthru
      _
    // Predicated region
    $region6: #{tpu_custom_call.1} parent=1 // pred_check
      _
    $region7: #{tpu_custom_call.1} parent=1 // pred_check_branch
      %20 = sbr.rel (0) target = $region9
    $region8: #{tpu_custom_call.1} parent=1 // pred_region
      _
    $region9: #{tpu_custom_call.1} parent=1 // pred_fallthru
      _
    // Predicated region
    $region10: #{tpu_custom_call.1} parent=1 // pred_check
      _
    $region11: #{tpu_custom_call.1} parent=1 // pred_check_branch
      %22 = sbr.rel (0) target = $region13
    $region12: #{tpu_custom_call.1} parent=1 // pred_region
      %23 = dma.done [#allocation3], 64
    $region13: #{tpu_custom_call.1} parent=1 // pred_fallthru
      _
    %v24 = vld [vmem:[#allocation2] sm:$0xf]
    %v25 = vld [vmem:[%s1] sm:$0x3]
    %v27 = vlaneseq
    %v28 = vshrl.u32 %v27, 7
    %v29 = vsub.s32 0, %v28
    %v30 = vrot.slane %v25, %v29
    %v31 = vlaneseq
    %v32 = vshrl.u32 %v31, 7
    %v33 = vsub.s32 1, %v32
    %v34 = vrot.slane %v25, %v33
    %v35 = vcombine.low %v30, %v34
    %v37 = vunpack.c.l.s4 1983009808
    %v38 = vunpack.c.0.s8 %v37
    %v39 = vlaneseq
    %v40 = vshrl.u32 %v39, 7
    %v41 = vsub.s32 %v38, %v40
    %v42 = vrot.slane %v35, %v41
    %v44 = vadd.f32 %v24, %v42
    %45 = vst [vmem:[#allocation5] sm:$0xf] %v44
    // Predicated region
    $region14: #{tpu_custom_call.1} parent=1 // pred_check
      _
    $region15: #{tpu_custom_call.1} parent=1 // pred_check_branch
      %47 = sbr.rel (0) target = $region17
    $region16: #{tpu_custom_call.1} parent=1 // pred_region
      %s49 = ssub.s32 64, 64
      %50 = vsyncadd [#allocation4], %s49
      %s52 = sshll.u32 [#allocation5], 4
      %s53 = int_to_ptr.vmem [resolvable:$true] %s52
      %55 = dma.vmem_to_hbm [thread:$0]  %s53, 64, %s2, [#allocation4]
    $region17: #{tpu_custom_call.1} parent=1 // pred_fallthru
      _
    // Predicated region
    $region18: #{tpu_custom_call.1} parent=1 // pred_check
      _
    $region19: #{tpu_custom_call.1} parent=1 // pred_check_branch
      %57 = sbr.rel (0) target = $region21
    $region20: #{tpu_custom_call.1} parent=1 // pred_region
      %58 = dma.done [#allocation4], 64
    $region21: #{tpu_custom_call.1} parent=1 // pred_fallthru
      _
    %59 = vsyncpa [#allocation3], 1
    %60 = vsyncpa [#allocation4], 1

</llo_original>
